<compile_context>
chip_gen: v7x
topology: tpu7x:2x2x1
jax: 0.10.0
libtpu: 0.0.40
codegen_flags: <defaults>
</compile_context>

<pallas_src>
import functools

import jax
import jax.numpy as jnp
from jax.experimental import pallas as pl
from jax.experimental.pallas import tpu as pltpu


# ----------------------------------------------------------------------------
# Helpers
# ----------------------------------------------------------------------------
def _round_up(x, m):
    return (x + m - 1) // m * m


def _pad2(x, rows, cols):
    r, c = x.shape
    return jnp.pad(x, ((0, rows - r), (0, cols - c)))


@functools.lru_cache(maxsize=None)
def _vmem_budget():
    """Scoped-VMEM limit: ~3/4 of physical VMEM, capped at 96 MiB (v5e/v6e have
    128 MiB physical), which lands at 48 MiB on v7x (64 MiB physical)."""
    try:
        cap = int(pltpu.get_tpu_info().vmem_capacity_bytes)
    except Exception:
        cap = 64 * 1024 * 1024
    return max(32 * 1024 * 1024, min(cap * 3 // 4, 96 * 1024 * 1024))


# ----------------------------------------------------------------------------
# Kernel 1: feature transform  Z = H @ W   (row-tiled; H read from HBM once)
# ----------------------------------------------------------------------------
def _feat_transform_kernel(h_ref, w_ref, o_ref):
    o_ref[...] = jnp.dot(h_ref[...], w_ref[...],
                         preferred_element_type=jnp.float32).astype(o_ref.dtype)


def _feat_transform(h_bf, w_p):
    n_pad, f_in_pad = h_bf.shape
    f_out_pad = w_p.shape[1]
    budget = _vmem_budget()

    # TODO(synk): for extremely wide f_in (>~16K) a k-split over f_in would be
    # needed; feature dims here are modest so a full-width H row tile is used.
    def use(tm):
        return (2 * tm * f_in_pad * 2          # H tile, double-buffered bf16
                + 2 * f_in_pad * f_out_pad * 2  # W (constant block)
                + 2 * tm * f_out_pad * 2)       # Z output tile

    tm = 128
    for t in (1024, 512, 256, 128):
        if n_pad % t == 0 and use(t) <= budget * 4 // 5:
            tm = t
            break

    return pl.pallas_call(
        _feat_transform_kernel,
        out_shape=jax.ShapeDtypeStruct((n_pad, f_out_pad), jnp.bfloat16),
        grid_spec=pltpu.PrefetchScalarGridSpec(
            num_scalar_prefetch=0,
            grid=(n_pad // tm,),
            in_specs=[pl.BlockSpec((tm, f_in_pad), lambda i: (i, 0)),
                      pl.BlockSpec((f_in_pad, f_out_pad), lambda i: (0, 0))],
            out_specs=pl.BlockSpec((tm, f_out_pad), lambda i: (i, 0)),
        ),
        compiler_params=pltpu.CompilerParams(
            dimension_semantics=("parallel",),
            vmem_limit_bytes=budget),
    )(h_bf, w_p)


# ----------------------------------------------------------------------------
# Kernel 2: aggregation  Y = epi(A @ Z + b)   ((i, k) grid, f32 accumulator)
# ----------------------------------------------------------------------------
def _aggregate_kernel(*refs, activation, has_bn):
    if has_bn:
        a_ref, z_ref, b_ref, scale_ref, shift_ref, o_ref, acc_ref = refs
    else:
        a_ref, z_ref, b_ref, o_ref, acc_ref = refs
        scale_ref = shift_ref = None

    k = pl.program_id(1)

    @pl.when(k == 0)
    def _init():
        acc_ref[...] = jnp.zeros_like(acc_ref)

    acc_ref[...] += jnp.dot(a_ref[...], z_ref[...],
                            preferred_element_type=jnp.float32)

    # Epilogue only on the last k step, entirely in f32 on the accumulator.
    @pl.when(k == pl.num_programs(1) - 1)
    def _finalize():
        y = acc_ref[...] + b_ref[...]            # bias (1,F) broadcasts over rows
        if activation:
            y = jnp.maximum(y, 0.0)              # ReLU (GraphConv activation)
        if has_bn:
            y = y * scale_ref[...] + shift_ref[...]   # folded eval-mode BatchNorm
        o_ref[...] = y.astype(o_ref.dtype)


def _select_agg_tiles(n_pad, f_out_pad, out_itemsize, budget):
    """Prefer growing tk (the streamed A / Z reduction axis) over tm."""
    def use(tm, tk):
        return (2 * tm * tk * 2                      # A tile (bf16, 2 buffers)
                + 2 * tk * f_out_pad * 2             # Z tile (bf16, 2 buffers)
                + tm * f_out_pad * 4                 # f32 accumulator scratch
                + 2 * tm * f_out_pad * out_itemsize  # output tile (2 buffers)
                + 6 * f_out_pad * 4)                 # bias / bn rows

    tm = next(t for t in (512, 256, 128) if n_pad % t == 0)
    tk = 128
    for cand in sorted({n_pad, 4096, 2048, 1024, 512, 256, 128}, reverse=True):
        if n_pad % cand == 0 and use(tm, cand) <= budget:
            tk = cand
            break
    return tm, tk


def _aggregate(a_bf, z_bf, b_p, scale_p, shift_p, *, activation, has_bn,
               out_dtype):
    n_pad = a_bf.shape[0]
    f_out_pad = z_bf.shape[1]
    budget = _vmem_budget()
    tm, tk = _select_agg_tiles(n_pad, f_out_pad,
                               jnp.dtype(out_dtype).itemsize, budget * 4 // 5)

    in_specs = [
        pl.BlockSpec((tm, tk), lambda i, k: (i, k)),           # A tile
        pl.BlockSpec((tk, f_out_pad), lambda i, k: (k, 0)),    # Z k-rows
        pl.BlockSpec((1, f_out_pad), lambda i, k: (0, 0)),     # bias
    ]
    args = [a_bf, z_bf, b_p]
    if has_bn:
        in_specs += [pl.BlockSpec((1, f_out_pad), lambda i, k: (0, 0)),  # scale
                     pl.BlockSpec((1, f_out_pad), lambda i, k: (0, 0))]  # shift
        args += [scale_p, shift_p]

    kernel = functools.partial(_aggregate_kernel, activation=activation,
                               has_bn=has_bn)
    return pl.pallas_call(
        kernel,
        out_shape=jax.ShapeDtypeStruct((n_pad, f_out_pad), out_dtype),
        grid_spec=pltpu.PrefetchScalarGridSpec(
            num_scalar_prefetch=0,
            grid=(n_pad // tm, n_pad // tk),
            in_specs=in_specs,
            out_specs=pl.BlockSpec((tm, f_out_pad), lambda i, k: (i, 0)),
            scratch_shapes=[pltpu.VMEM((tm, f_out_pad), jnp.float32)],
        ),
        compiler_params=pltpu.CompilerParams(
            dimension_semantics=("parallel", "arbitrary"),
            vmem_limit_bytes=budget),
    )(*args)


# ----------------------------------------------------------------------------
# One fused GraphConv layer (large-graph tiled path)
# ----------------------------------------------------------------------------
def graph_conv(a_bf, h_bf, w, b, *, activation, bn_scale=None, bn_shift=None,
               out_dtype=jnp.bfloat16):
    """out = epi(A_hat @ (H @ W) + b) on padded bf16 operands.

    Returns (n_pad, f_out_pad) of `out_dtype`; valid region is [:n, :f_out].
    """
    f_in_pad = h_bf.shape[1]
    f_out = w.shape[1]
    f_out_pad = _round_up(f_out, 128)

    # Zero padding keeps padded rows/cols mathematically inert.
    w_p = _pad2(w, f_in_pad, f_out_pad).astype(jnp.bfloat16)
    b_p = jnp.pad(b, (0, f_out_pad - f_out)).reshape(1, f_out_pad).astype(jnp.float32)
    has_bn = bn_scale is not None
    if has_bn:
        scale_p = jnp.pad(bn_scale, (0, f_out_pad - f_out)).reshape(1, f_out_pad).astype(jnp.float32)
        shift_p = jnp.pad(bn_shift, (0, f_out_pad - f_out)).reshape(1, f_out_pad).astype(jnp.float32)
    else:
        scale_p = shift_p = None

    z_bf = _feat_transform(h_bf, w_p)   # H read from HBM exactly once
    return _aggregate(a_bf, z_bf, b_p, scale_p, shift_p, activation=activation,
                      has_bn=has_bn, out_dtype=out_dtype)


# ----------------------------------------------------------------------------
# Fully fused small-graph path: the whole multi-layer forward in one kernel
# ----------------------------------------------------------------------------
def _fused_gcn_kernel(*refs, n_hidden_layers):
    a_ref, h_ref = refs[0], refs[1]
    idx = 2
    hidden = []
    for _ in range(n_hidden_layers):
        hidden.append((refs[idx], refs[idx + 1]))
        idx += 2
    w_out_ref, b_out_ref = refs[idx], refs[idx + 1]
    scale_ref, shift_ref = refs[idx + 2], refs[idx + 3]
    h_out_ref, x_out_ref = refs[idx + 4], refs[idx + 5]

    a = a_ref[...]          # bf16, fully VMEM-resident
    h = h_ref[...]          # bf16
    for l, (w_ref, b_ref) in enumerate(hidden):
        z = jnp.dot(h, w_ref[...], preferred_element_type=jnp.float32)
        y = jnp.dot(a, z.astype(a.dtype),
                    preferred_element_type=jnp.float32) + b_ref[...]
        y = jnp.maximum(y, 0.0)                       # GraphConv activation
        if l == n_hidden_layers - 1:
            y = y * scale_ref[...] + shift_ref[...]   # eval-mode BatchNorm1d
            h_out_ref[...] = y.astype(h_out_ref.dtype)
        h = y.astype(jnp.bfloat16)
    z = jnp.dot(h, w_out_ref[...], preferred_element_type=jnp.float32)
    x = jnp.dot(a, z.astype(a.dtype),
                preferred_element_type=jnp.float32) + b_out_ref[...]
    x_out_ref[...] = x.astype(x_out_ref.dtype)


def _fused_fits(n_pad, f_in_pad, f_h_pad, f_c_pad, n_hidden_layers):
    f_max = max(f_in_pad, f_h_pad, f_c_pad)
    est = (n_pad * n_pad * 2                                 # A (bf16)
           + n_pad * f_in_pad * 2                            # H (bf16)
           + (n_hidden_layers + 1) * f_max * f_max * 2       # weights
           + 6 * n_pad * f_max * 4)                          # temps + outputs
    return est <= min(_vmem_budget() // 2, 24 * 1024 * 1024)


# ----------------------------------------------------------------------------
# GCN model
# ----------------------------------------------------------------------------
def init_gcn_params(key, in_feats, n_hidden, n_classes, n_layers):
    params = {"layers": []}
    dims_in = [in_feats] + [n_hidden] * (n_layers - 1)
    for d_in in dims_in:
        key, kw, kb = jax.random.split(key, 3)
        w = jax.random.normal(kw, (d_in, n_hidden), jnp.float32) * 0.1
        b = jax.random.normal(kb, (n_hidden,), jnp.float32) * 0.01
        params["layers"].append((w, b))
    key, kw, kb = jax.random.split(key, 3)
    params["out_w"] = jax.random.normal(kw, (n_hidden, n_classes), jnp.float32) * 0.1
    params["out_b"] = jax.random.normal(kb, (n_classes,), jnp.float32) * 0.01
    # BatchNorm1d(n_hidden): gamma=1, beta=0, running_mean=0, running_var=1
    params["bn_gamma"] = jnp.ones((n_hidden,), jnp.float32)
    params["bn_beta"] = jnp.zeros((n_hidden,), jnp.float32)
    params["bn_mean"] = jnp.zeros((n_hidden,), jnp.float32)
    params["bn_var"] = jnp.ones((n_hidden,), jnp.float32)
    return params


def normalized_adjacency(adj):
    """A_hat = D^{-1/2} A D^{-1/2}  (adjacency already includes self loops)."""
    deg = jnp.sum(adj, axis=1)
    d_inv_sqrt = 1.0 / jnp.sqrt(jnp.maximum(deg, 1.0))
    return adj * d_inv_sqrt[:, None] * d_inv_sqrt[None, :]


def gcn_forward(a_hat, features, params, eps=1e-5, force_tiled=False):
    n, f_in = features.shape
    n_hidden = params["layers"][0][0].shape[1]
    n_classes = params["out_w"].shape[1]
    n_hidden_layers = len(params["layers"])

    n_pad = _round_up(n, 128)
    f_in_pad = _round_up(f_in, 128)
    f_h_pad = _round_up(n_hidden, 128)
    f_c_pad = _round_up(n_classes, 128)

    # Eval-mode BatchNorm1d folded to a per-feature affine (applied after the
    # last hidden GraphConv's ReLU, matching h = bn(h) in the reference).
    bn_scale = params["bn_gamma"] * jax.lax.rsqrt(params["bn_var"] + eps)
    bn_shift = params["bn_beta"] - params["bn_mean"] * bn_scale

    # Zero-pad once.  Padded rows/cols of A_hat are zero, so padded node rows
    # (which pick up relu(bias) in the epilogue) never contaminate valid rows;
    # they are sliced away at the end.
    a_bf = _pad2(a_hat, n_pad, n_pad).astype(jnp.bfloat16)
    h_bf = _pad2(features, n_pad, f_in_pad).astype(jnp.bfloat16)

    # TODO(synk): dropout is identity here (eval mode); training-mode RNG
    # dropout has no deterministic PyTorch-matching equivalent.
    if (not force_tiled) and _fused_fits(n_pad, f_in_pad, f_h_pad, f_c_pad,
                                         n_hidden_layers):
        # Small-graph path: everything VMEM-resident, one kernel, no
        # inter-layer HBM round trips.
        args = [a_bf, h_bf]
        prev = f_in_pad
        for w, b in params["layers"]:
            args.append(_pad2(w, prev, f_h_pad).astype(jnp.bfloat16))
            args.append(jnp.pad(b, (0, f_h_pad - n_hidden))
                        .reshape(1, f_h_pad).astype(jnp.float32))
            prev = f_h_pad
        args.append(_pad2(params["out_w"], f_h_pad, f_c_pad).astype(jnp.bfloat16))
        args.append(jnp.pad(params["out_b"], (0, f_c_pad - n_classes))
                    .reshape(1, f_c_pad).astype(jnp.float32))
        args.append(jnp.pad(bn_scale, (0, f_h_pad - n_hidden))
                    .reshape(1, f_h_pad).astype(jnp.float32))
        args.append(jnp.pad(bn_shift, (0, f_h_pad - n_hidden))
                    .reshape(1, f_h_pad).astype(jnp.float32))

        kernel = functools.partial(_fused_gcn_kernel,
                                   n_hidden_layers=n_hidden_layers)
        h_p, x_p = pl.pallas_call(
            kernel,
            out_shape=(jax.ShapeDtypeStruct((n_pad, f_h_pad), jnp.float32),
                       jax.ShapeDtypeStruct((n_pad, f_c_pad), jnp.float32)),
            compiler_params=pltpu.CompilerParams(
                vmem_limit_bytes=_vmem_budget()),
        )(*args)
    else:
        # Large-graph path: per-layer hoisted Z kernel + big-tile A@Z kernel,
        # bf16 hidden outputs (halves inter-layer HBM writeback).
        for i, (w, b) in enumerate(params["layers"]):
            last = i == n_hidden_layers - 1
            h_bf = graph_conv(a_bf, h_bf, w, b, activation=True,
                              bn_scale=bn_scale if last else None,
                              bn_shift=bn_shift if last else None,
                              out_dtype=jnp.bfloat16)
        x_p = graph_conv(a_bf, h_bf, params["out_w"], params["out_b"],
                         activation=False, out_dtype=jnp.float32)
        h_p = h_bf

    h = h_p[:n, :n_hidden].astype(jnp.float32)   # BN(relu(last hidden conv))
    x = x_p[:n, :n_classes].astype(jnp.float32)  # output GraphConv logits
    return h, x


# ----------------------------------------------------------------------------
if __name__ == "__main__":
    key = jax.random.PRNGKey(0)

    N = 32          # number of graph nodes
    in_feats = 16
    n_hidden = 32
    n_classes = 8
    n_layers = 2    # 2 hidden GraphConv layers + output GraphConv

    # Deterministic synthetic graph: random symmetric adjacency + self loops.
    key, k_adj, k_feat, k_param = jax.random.split(key, 4)
    rand = jax.random.uniform(k_adj, (N, N))
    adj = (rand + rand.T > 1.4).astype(jnp.float32)
    adj = jnp.clip(adj + jnp.eye(N, dtype=jnp.float32), 0.0, 1.0)
    a_hat = normalized_adjacency(adj)

    features = jax.random.normal(k_feat, (N, in_feats), jnp.float32)
    params = init_gcn_params(k_param, in_feats, n_hidden, n_classes, n_layers)

    # Default path (fused single-kernel at this size).
    h, x = jax.jit(gcn_forward)(a_hat, features, params)
    jax.block_until_ready((h, x))

    # Also exercise and cross-check the large-graph tiled path.
    h_t, x_t = jax.jit(functools.partial(gcn_forward, force_tiled=True))(
        a_hat, features, params)
    jax.block_until_ready((h_t, x_t))

    assert h.shape == (N, n_hidden) and x.shape == (N, n_classes)
    assert jnp.all(jnp.isfinite(h)) and jnp.all(jnp.isfinite(x))
    assert jnp.allclose(h, h_t, atol=5e-2, rtol=5e-2)
    assert jnp.allclose(x, x_t, atol=5e-2, rtol=5e-2)
    print("KERNEL_OK")
</pallas_src>

<mosaic_0001>
module attributes {stable_mosaic.version = 11 : i64} {
  func.func @_fused_gcn_kernel(%arg0: memref<128x128xbf16, #tpu.memory_space<vmem>>, %arg1: memref<128x128xbf16, #tpu.memory_space<vmem>>, %arg2: memref<128x128xbf16, #tpu.memory_space<vmem>>, %arg3: memref<1x128xf32, #tpu.memory_space<vmem>>, %arg4: memref<128x128xbf16, #tpu.memory_space<vmem>>, %arg5: memref<1x128xf32, #tpu.memory_space<vmem>>, %arg6: memref<128x128xbf16, #tpu.memory_space<vmem>>, %arg7: memref<1x128xf32, #tpu.memory_space<vmem>>, %arg8: memref<1x128xf32, #tpu.memory_space<vmem>>, %arg9: memref<1x128xf32, #tpu.memory_space<vmem>>, %arg10: memref<128x128xf32, #tpu.memory_space<vmem>>, %arg11: memref<128x128xf32, #tpu.memory_space<vmem>>) attributes {dimension_semantics = [], scalar_prefetch = 0 : i64, scratch_operands = 0 : i64, tpu.core_type = #tpu.core_type<tc>} {
    %c0 = arith.constant 0 : index
    %c0_0 = arith.constant 0 : index
    %0 = vector.load %arg0[%c0, %c0_0] : memref<128x128xbf16, #tpu.memory_space<vmem>>, vector<128x128xbf16>
    %c0_1 = arith.constant 0 : index
    %c0_2 = arith.constant 0 : index
    %1 = vector.load %arg1[%c0_1, %c0_2] : memref<128x128xbf16, #tpu.memory_space<vmem>>, vector<128x128xbf16>
    %c0_3 = arith.constant 0 : index
    %c0_4 = arith.constant 0 : index
    %2 = vector.load %arg2[%c0_3, %c0_4] : memref<128x128xbf16, #tpu.memory_space<vmem>>, vector<128x128xbf16>
    %cst = arith.constant dense<0.000000e+00> : vector<128x128xf32>
    %3 = tpu.matmul %1, %2, %cst {dimension_numbers = #tpu.dot_dimension_numbers<[1], [0], [0], [1], [0, 0, 1, 1], [], []>} : vector<128x128xbf16>, vector<128x128xbf16>, vector<128x128xf32> -> vector<128x128xf32>
    %4 = arith.truncf %3 : vector<128x128xf32> to vector<128x128xbf16>
    %cst_5 = arith.constant dense<0.000000e+00> : vector<128x128xf32>
    %5 = tpu.matmul %0, %4, %cst_5 {dimension_numbers = #tpu.dot_dimension_numbers<[1], [0], [0], [1], [0, 0, 1, 1], [], []>} : vector<128x128xbf16>, vector<128x128xbf16>, vector<128x128xf32> -> vector<128x128xf32>
    %c0_6 = arith.constant 0 : index
    %c0_7 = arith.constant 0 : index
    %6 = vector.load %arg3[%c0_6, %c0_7] : memref<1x128xf32, #tpu.memory_space<vmem>>, vector<1x128xf32>
    %7 = vector.broadcast %6 : vector<1x128xf32> to vector<128x128xf32>
    %8 = arith.addf %5, %7 : vector<128x128xf32>
    %cst_8 = arith.constant 0.000000e+00 : f32
    %9 = vector.broadcast %cst_8 : f32 to vector<128x128xf32>
    %10 = arith.maximumf %8, %9 : vector<128x128xf32>
    %11 = arith.truncf %10 : vector<128x128xf32> to vector<128x128xbf16>
    %c0_9 = arith.constant 0 : index
    %c0_10 = arith.constant 0 : index
    %12 = vector.load %arg4[%c0_9, %c0_10] : memref<128x128xbf16, #tpu.memory_space<vmem>>, vector<128x128xbf16>
    %cst_11 = arith.constant dense<0.000000e+00> : vector<128x128xf32>
    %13 = tpu.matmul %11, %12, %cst_11 {dimension_numbers = #tpu.dot_dimension_numbers<[1], [0], [0], [1], [0, 0, 1, 1], [], []>} : vector<128x128xbf16>, vector<128x128xbf16>, vector<128x128xf32> -> vector<128x128xf32>
    %14 = arith.truncf %13 : vector<128x128xf32> to vector<128x128xbf16>
    %cst_12 = arith.constant dense<0.000000e+00> : vector<128x128xf32>
    %15 = tpu.matmul %0, %14, %cst_12 {dimension_numbers = #tpu.dot_dimension_numbers<[1], [0], [0], [1], [0, 0, 1, 1], [], []>} : vector<128x128xbf16>, vector<128x128xbf16>, vector<128x128xf32> -> vector<128x128xf32>
    %c0_13 = arith.constant 0 : index
    %c0_14 = arith.constant 0 : index
    %16 = vector.load %arg5[%c0_13, %c0_14] : memref<1x128xf32, #tpu.memory_space<vmem>>, vector<1x128xf32>
    %17 = vector.broadcast %16 : vector<1x128xf32> to vector<128x128xf32>
    %18 = arith.addf %15, %17 : vector<128x128xf32>
    %cst_15 = arith.constant 0.000000e+00 : f32
    %19 = vector.broadcast %cst_15 : f32 to vector<128x128xf32>
    %20 = arith.maximumf %18, %19 : vector<128x128xf32>
    %c0_16 = arith.constant 0 : index
    %c0_17 = arith.constant 0 : index
    %21 = vector.load %arg8[%c0_16, %c0_17] : memref<1x128xf32, #tpu.memory_space<vmem>>, vector<1x128xf32>
    %22 = vector.broadcast %21 : vector<1x128xf32> to vector<128x128xf32>
    %23 = arith.mulf %20, %22 : vector<128x128xf32>
    %c0_18 = arith.constant 0 : index
    %c0_19 = arith.constant 0 : index
    %24 = vector.load %arg9[%c0_18, %c0_19] : memref<1x128xf32, #tpu.memory_space<vmem>>, vector<1x128xf32>
    %25 = vector.broadcast %24 : vector<1x128xf32> to vector<128x128xf32>
    %26 = arith.addf %23, %25 : vector<128x128xf32>
    %c0_20 = arith.constant 0 : index
    %c0_21 = arith.constant 0 : index
    %27 = vector.load %arg10[%c0_20, %c0_21] : memref<128x128xf32, #tpu.memory_space<vmem>>, vector<128x128xf32>
    tpu.vector_store %arg10[%c0_20, %c0_21], %26 {strides = array<i32>} : memref<128x128xf32, #tpu.memory_space<vmem>>, vector<128x128xf32>,
    %28 = arith.truncf %26 : vector<128x128xf32> to vector<128x128xbf16>
    %c0_22 = arith.constant 0 : index
    %c0_23 = arith.constant 0 : index
    %29 = vector.load %arg6[%c0_22, %c0_23] : memref<128x128xbf16, #tpu.memory_space<vmem>>, vector<128x128xbf16>
    %cst_24 = arith.constant dense<0.000000e+00> : vector<128x128xf32>
    %30 = tpu.matmul %28, %29, %cst_24 {dimension_numbers = #tpu.dot_dimension_numbers<[1], [0], [0], [1], [0, 0, 1, 1], [], []>} : vector<128x128xbf16>, vector<128x128xbf16>, vector<128x128xf32> -> vector<128x128xf32>
    %31 = arith.truncf %30 : vector<128x128xf32> to vector<128x128xbf16>
    %cst_25 = arith.constant dense<0.000000e+00> : vector<128x128xf32>
    %32 = tpu.matmul %0, %31, %cst_25 {dimension_numbers = #tpu.dot_dimension_numbers<[1], [0], [0], [1], [0, 0, 1, 1], [], []>} : vector<128x128xbf16>, vector<128x128xbf16>, vector<128x128xf32> -> vector<128x128xf32>
    %c0_26 = arith.constant 0 : index
    %c0_27 = arith.constant 0 : index
    %33 = vector.load %arg7[%c0_26, %c0_27] : memref<1x128xf32, #tpu.memory_space<vmem>>, vector<1x128xf32>
    %34 = vector.broadcast %33 : vector<1x128xf32> to vector<128x128xf32>
    %35 = arith.addf %32, %34 : vector<128x128xf32>
    %c0_28 = arith.constant 0 : index
    %c0_29 = arith.constant 0 : index
    %36 = vector.load %arg11[%c0_28, %c0_29] : memref<128x128xf32, #tpu.memory_space<vmem>>, vector<128x128xf32>
    tpu.vector_store %arg11[%c0_28, %c0_29], %35 {strides = array<i32>} : memref<128x128xf32, #tpu.memory_space<vmem>>, vector<128x128xf32>,
    return
  }
}

</mosaic_0001>

<llo_original>
// kernel: gcn_forward.1
$region0: #{gcn_forward.1}
  #allocation0 [shape = 'u32[]', space=smem, size = 0x4, offset = 0x4, fixed_abs, tag = 'smem constant byte address 0x4 - core index']
  #allocation1 [shape = 'u32[144,128]{1,0:T(1,128)}', space=vmem, size = 0x12000, scoped, tag = 'internal scratch']
  %s0 = inlined_call_operand.vmem [shape: bf16[128,128], index: 0, kind: input, shape index: {}]
  %s1 = inlined_call_operand.vmem [shape: bf16[128,128], index: 1, kind: input, shape index: {}]
  %s2 = inlined_call_operand.vmem [shape: bf16[128,128], index: 2, kind: input, shape index: {}]
  %s3 = inlined_call_operand.vmem [shape: f32[1,128], index: 3, kind: input, shape index: {}]
  %s4 = inlined_call_operand.vmem [shape: bf16[128,128], index: 4, kind: input, shape index: {}]
  %s5 = inlined_call_operand.vmem [shape: f32[1,128], index: 5, kind: input, shape index: {}]
  %s6 = inlined_call_operand.vmem [shape: bf16[128,128], index: 6, kind: input, shape index: {}]
  %s7 = inlined_call_operand.vmem [shape: f32[1,128], index: 7, kind: input, shape index: {}]
  %s8 = inlined_call_operand.vmem [shape: f32[1,128], index: 8, kind: input, shape index: {}]
  %s9 = inlined_call_operand.vmem [shape: f32[1,128], index: 9, kind: input, shape index: {}]
  %s10 = inlined_call_operand.vmem [shape: f32[128,128], index: 10, kind: output, shape index: {0}]
  %s11 = inlined_call_operand.vmem [shape: f32[128,128], index: 11, kind: output, shape index: {1}]
  %12 = xla_tuple %s10, %s11
  %s13 = sld [smem:[#allocation0]]
  $region58: #{gcn_forward.1} parent=0
    _
  %s15 = ssub.s32 1, %s13
  %s16 = scalar_select 0, %s15, %s13
  // Predicated region
  $region2: #{gcn_forward.1} parent=0 // pred_check
    _
  $region3: #{gcn_forward.1} parent=0 // pred_check_branch
    %18 = sbr.rel (0) target = $region5
  $region4: #{gcn_forward.1} parent=0 // pred_region
    _
  $region5: #{gcn_forward.1} parent=0 // pred_fallthru
    _
  // Predicated region
  $region6: #{gcn_forward.1} parent=0 // pred_check
    _
  $region7: #{gcn_forward.1} parent=0 // pred_check_branch
    %20 = sbr.rel (0) target = $region9
  $region8: #{gcn_forward.1} parent=0 // pred_region
    _
  $region9: #{gcn_forward.1} parent=0 // pred_fallthru
    _
  // Predicated region
  $region10: #{gcn_forward.1} parent=0 // pred_check
    _
  $region11: #{gcn_forward.1} parent=0 // pred_check_branch
    %22 = sbr.rel (0) target = $region13
  $region12: #{gcn_forward.1} parent=0 // pred_region
    _
  $region13: #{gcn_forward.1} parent=0 // pred_fallthru
    _
  // Predicated region
  $region14: #{gcn_forward.1} parent=0 // pred_check
    _
  $region15: #{gcn_forward.1} parent=0 // pred_check_branch
    %24 = sbr.rel (0) target = $region17
  $region16: #{gcn_forward.1} parent=0 // pred_region
    _
  $region17: #{gcn_forward.1} parent=0 // pred_fallthru
    _
  // Predicated region
  $region18: #{gcn_forward.1} parent=0 // pred_check
    _
  $region19: #{gcn_forward.1} parent=0 // pred_check_branch
    %26 = sbr.rel (0) target = $region21
  $region20: #{gcn_forward.1} parent=0 // pred_region
    _
  $region21: #{gcn_forward.1} parent=0 // pred_fallthru
    _
  // Predicated region
  $region22: #{gcn_forward.1} parent=0 // pred_check
    _
  $region23: #{gcn_forward.1} parent=0 // pred_check_branch
    %28 = sbr.rel (0) target = $region25
  $region24: #{gcn_forward.1} parent=0 // pred_region
    _
  $region25: #{gcn_forward.1} parent=0 // pred_fallthru
    _
  // Predicated region
  $region26: #{gcn_forward.1} parent=0 // pred_check
    _
  $region27: #{gcn_forward.1} parent=0 // pred_check_branch
    %30 = sbr.rel (0) target = $region29
  $region28: #{gcn_forward.1} parent=0 // pred_region
    _
  $region29: #{gcn_forward.1} parent=0 // pred_fallthru
    _
  // Predicated region
  $region30: #{gcn_forward.1} parent=0 // pred_check
    _
  $region31: #{gcn_forward.1} parent=0 // pred_check_branch
    %32 = sbr.rel (0) target = $region33
  $region32: #{gcn_forward.1} parent=0 // pred_region
    _
  $region33: #{gcn_forward.1} parent=0 // pred_fallthru
    _
  // Predicated region
  $region34: #{gcn_forward.1} parent=0 // pred_check
    _
  $region35: #{gcn_forward.1} parent=0 // pred_check_branch
    %34 = sbr.rel (0) target = $region37
  $region36: #{gcn_forward.1} parent=0 // pred_region
    _
  $region37: #{gcn_forward.1} parent=0 // pred_fallthru
    _
  // Predicated region
  $region38: #{gcn_forward.1} parent=0 // pred_check
    _
  $region39: #{gcn_forward.1} parent=0 // pred_check_branch
    %36 = sbr.rel (0) target = $region41
  $region40: #{gcn_forward.1} parent=0 // pred_region
    _
  $region41: #{gcn_forward.1} parent=0 // pred_fallthru
    _
  %v38 = vld [vmem:[%s0] sm:$0xf]
  %v39 = vld [vmem:[%s0 + $0x4] sm:$0xf]
  %v40 = vld [vmem:[%s0 + $0x8] sm:$0xf]
  %v41 = vld [vmem:[%s0 + $0xc] sm:$0xf]
  %v42 = vld [vmem:[%s0 + $0x10] sm:$0xf]
  %v43 = vld [vmem:[%s0 + $0x14] sm:$0xf]
  %v44 = vld [vmem:[%s0 + $0x18] sm:$0xf]
  %v45 = vld [vmem:[%s0 + $0x1c] sm:$0xf]
  %v46 = vld [vmem:[%s0 + $0x20] sm:$0xf]
  %v47 = vld [vmem:[%s0 + $0x24] sm:$0xf]
  %v48 = vld [vmem:[%s0 + $0x28] sm:$0xf]
  %v49 = vld [vmem:[%s0 + $0x2c] sm:$0xf]
  %v50 = vld [vmem:[%s0 + $0x30] sm:$0xf]
  %v51 = vld [vmem:[%s0 + $0x34] sm:$0xf]
  %v52 = vld [vmem:[%s0 + $0x38] sm:$0xf]
  %v53 = vld [vmem:[%s0 + $0x3c] sm:$0xf]
  %v54 = vld [vmem:[%s1] sm:$0xf]
  %v55 = vld [vmem:[%s1 + $0x4] sm:$0xf]
  %v56 = vld [vmem:[%s1 + $0x8] sm:$0xf]
  %v57 = vld [vmem:[%s1 + $0xc] sm:$0xf]
  %v58 = vld [vmem:[%s1 + $0x10] sm:$0xf]
  %v59 = vld [vmem:[%s1 + $0x14] sm:$0xf]
  %v60 = vld [vmem:[%s1 + $0x18] sm:$0xf]
  %v61 = vld [vmem:[%s1 + $0x1c] sm:$0xf]
  %v62 = vld [vmem:[%s1 + $0x20] sm:$0xf]
  %v63 = vld [vmem:[%s1 + $0x24] sm:$0xf]
  %v64 = vld [vmem:[%s1 + $0x28] sm:$0xf]
  %v65 = vld [vmem:[%s1 + $0x2c] sm:$0xf]
  %v66 = vld [vmem:[%s1 + $0x30] sm:$0xf]
  %v67 = vld [vmem:[%s1 + $0x34] sm:$0xf]
  %v68 = vld [vmem:[%s1 + $0x38] sm:$0xf]
  %v69 = vld [vmem:[%s1 + $0x3c] sm:$0xf]
  %v70 = vld [vmem:[%s2] sm:$0xf]
  %v71 = vld [vmem:[%s2 + $0x4] sm:$0xf]
  %v72 = vld [vmem:[%s2 + $0x8] sm:$0xf]
  %v73 = vld [vmem:[%s2 + $0xc] sm:$0xf]
  %v74 = vld [vmem:[%s2 + $0x10] sm:$0xf]
  %v75 = vld [vmem:[%s2 + $0x14] sm:$0xf]
  %v76 = vld [vmem:[%s2 + $0x18] sm:$0xf]
  %v77 = vld [vmem:[%s2 + $0x1c] sm:$0xf]
  %v78 = vld [vmem:[%s2 + $0x20] sm:$0xf]
  %v79 = vld [vmem:[%s2 + $0x24] sm:$0xf]
  %v80 = vld [vmem:[%s2 + $0x28] sm:$0xf]
  %v81 = vld [vmem:[%s2 + $0x2c] sm:$0xf]
  %v82 = vld [vmem:[%s2 + $0x30] sm:$0xf]
  %v83 = vld [vmem:[%s2 + $0x34] sm:$0xf]
  %v84 = vld [vmem:[%s2 + $0x38] sm:$0xf]
  %v85 = vld [vmem:[%s2 + $0x3c] sm:$0xf]
  %v102 = vunpack.c.l.b16 %v54
  %v103 = vunpack.c.l.b16 %v55
  %v104 = vunpack.c.l.b16 %v56
  %v105 = vunpack.c.l.b16 %v57
  %v106 = vunpack.c.l.b16 %v58
  %v107 = vunpack.c.l.b16 %v59
  %v108 = vunpack.c.l.b16 %v60
  %v109 = vunpack.c.l.b16 %v61
  %v110 = vunpack.c.l.b16 %v62
  %v111 = vunpack.c.l.b16 %v63
  %v112 = vunpack.c.l.b16 %v64
  %v113 = vunpack.c.l.b16 %v65
  %v114 = vunpack.c.l.b16 %v66
  %v115 = vunpack.c.l.b16 %v67
  %v116 = vunpack.c.l.b16 %v68
  %v117 = vunpack.c.l.b16 %v69
  %v118 = vpack.c.b16 %v103, %v102
  %v119 = vpack.c.b16 %v105, %v104
  %v120 = vpack.c.b16 %v107, %v106
  %v121 = vpack.c.b16 %v109, %v108
  %v122 = vpack.c.b16 %v111, %v110
  %v123 = vpack.c.b16 %v113, %v112
  %v124 = vpack.c.b16 %v115, %v114
  %v125 = vpack.c.b16 %v117, %v116
  %v150 = vunpack.c.l.b16 %v70
  %v151 = vunpack.c.l.b16 %v71
  %v152 = vunpack.c.l.b16 %v72
  %v153 = vunpack.c.l.b16 %v73
  %v154 = vunpack.c.l.b16 %v74
  %v155 = vunpack.c.l.b16 %v75
  %v156 = vunpack.c.l.b16 %v76
  %v157 = vunpack.c.l.b16 %v77
  %v158 = vunpack.c.l.b16 %v78
  %v159 = vunpack.c.l.b16 %v79
  %v160 = vunpack.c.l.b16 %v80
  %v161 = vunpack.c.l.b16 %v81
  %v162 = vunpack.c.l.b16 %v82
  %v163 = vunpack.c.l.b16 %v83
  %v164 = vunpack.c.l.b16 %v84
  %v165 = vunpack.c.l.b16 %v85
  %v166 = vpack.c.b16 %v151, %v150
  %v167 = vpack.c.b16 %v153, %v152
  %v168 = vpack.c.b16 %v155, %v154
  %v169 = vpack.c.b16 %v157, %v156
  %v170 = vpack.c.b16 %v159, %v158
  %v171 = vpack.c.b16 %v161, %v160
  %v172 = vpack.c.b16 %v163, %v162
  %v173 = vpack.c.b16 %v165, %v164
  %182 = vmatprep.subr.bf16.mxu0 0
  %183 = vmatpush1.bf16.msra.mxu0 %v166
  %184 = vmatprep.subr.bf16.mxu0 0
  %185 = vmatpush1.bf16.msra.mxu0 %v167
  %186 = vmatprep.subr.bf16.mxu0 0
  %187 = vmatpush1.bf16.msra.mxu0 %v168
  %188 = vmatprep.subr.bf16.mxu0 0
  %189 = vmatpush1.bf16.msra.mxu0 %v169
  %190 = vmatprep.subr.bf16.mxu0 0
  %191 = vmatpush1.bf16.msra.mxu0 %v170
  %192 = vmatprep.subr.bf16.mxu0 0
  %193 = vmatpush1.bf16.msra.mxu0 %v171
  %194 = vmatprep.subr.bf16.mxu0 0
  %195 = vmatpush1.bf16.msra.mxu0 %v172
  %196 = vmatprep.subr.bf16.mxu0 0
  %197 = vmatpush1.bf16.msra.mxu0 %v173
  %198 = vmatprep.subr.bf16.mxu0 0
  %199 = vmatpush1.bf16.msra.mxu0 0
  %200 = vmatprep.subr.bf16.mxu0 0
  %201 = vmatpush1.bf16.msra.mxu0 0
  %202 = vmatprep.subr.bf16.mxu0 0
  %203 = vmatpush1.bf16.msra.mxu0 0
  %204 = vmatprep.subr.bf16.mxu0 0
  %205 = vmatpush1.bf16.msra.mxu0 0
  %206 = vmatprep.subr.bf16.mxu0 0
  %207 = vmatpush1.bf16.msra.mxu0 0
  %208 = vmatprep.subr.bf16.mxu0 0
  %209 = vmatpush1.bf16.msra.mxu0 0
  %210 = vmatprep.subr.bf16.mxu0 0
  %211 = vmatpush1.bf16.msra.mxu0 0
  %212 = vmatprep.subr.bf16.mxu0 0
  %213 = vmatpush1.bf16.msra.mxu0 0
  %214 = vmatprep.mubr.bf16.mxu0 0
  %215 = vmatmul.mubr.bf16.gmra.mrb[0].mxu0 %v118
  %v216 = vpop.f32.mrb[0].mxu0
  %v217 = vadd.f32 0.0, %v216
  %v218 = vpop.f32.mrb[0].mxu0
  %v219 = vpop.f32.mrb[0].mxu0
  %v220 = vadd.f32 0.0, %v219
  %v221 = vpop.f32.mrb[0].mxu0
  %222 = vmatprep.mubr.bf16.mxu0 0
  %223 = vmatmul.mubr.bf16.gmra.mrb[0].mxu0 %v119
  %v224 = vpop.f32.mrb[0].mxu0
  %v225 = vadd.f32 0.0, %v224
  %v226 = vpop.f32.mrb[0].mxu0
  %v227 = vpop.f32.mrb[0].mxu0
  %v228 = vadd.f32 0.0, %v227
  %v229 = vpop.f32.mrb[0].mxu0
  %230 = vmatprep.mubr.bf16.mxu0 0
  %231 = vmatmul.mubr.bf16.gmra.mrb[0].mxu0 %v120
  %v232 = vpop.f32.mrb[0].mxu0
  %v233 = vadd.f32 0.0, %v232
  %v234 = vpop.f32.mrb[0].mxu0
  %v235 = vpop.f32.mrb[0].mxu0
  %v236 = vadd.f32 0.0, %v235
  %v237 = vpop.f32.mrb[0].mxu0
  %238 = vmatprep.mubr.bf16.mxu0 0
  %239 = vmatmul.mubr.bf16.gmra.mrb[0].mxu0 %v121
  %v240 = vpop.f32.mrb[0].mxu0
  %v241 = vadd.f32 0.0, %v240
  %v242 = vpop.f32.mrb[0].mxu0
  %v243 = vpop.f32.mrb[0].mxu0
  %v244 = vadd.f32 0.0, %v243
  %v245 = vpop.f32.mrb[0].mxu0
  %246 = vmatprep.mubr.bf16.mxu0 0
  %247 = vmatmul.mubr.bf16.gmra.mrb[0].mxu0 %v122
  %v248 = vpop.f32.mrb[0].mxu0
  %v249 = vadd.f32 0.0, %v248
  %v250 = vpop.f32.mrb[0].mxu0
  %v251 = vpop.f32.mrb[0].mxu0
  %v252 = vadd.f32 0.0, %v251
  %v253 = vpop.f32.mrb[0].mxu0
  %254 = vmatprep.mubr.bf16.mxu0 0
  %255 = vmatmul.mubr.bf16.gmra.mrb[0].mxu0 %v123
  %v256 = vpop.f32.mrb[0].mxu0
  %v257 = vadd.f32 0.0, %v256
  %v258 = vpop.f32.mrb[0].mxu0
  %v259 = vpop.f32.mrb[0].mxu0
  %v260 = vadd.f32 0.0, %v259
  %v261 = vpop.f32.mrb[0].mxu0
  %262 = vmatprep.mubr.bf16.mxu0 0
  %263 = vmatmul.mubr.bf16.gmra.mrb[0].mxu0 %v124
  %v264 = vpop.f32.mrb[0].mxu0
  %v265 = vadd.f32 0.0, %v264
  %v266 = vpop.f32.mrb[0].mxu0
  %v267 = vpop.f32.mrb[0].mxu0
  %v268 = vadd.f32 0.0, %v267
  %v269 = vpop.f32.mrb[0].mxu0
  %270 = vmatprep.mubr.bf16.mxu0 0
  %271 = vmatmul.mubr.bf16.gmra.mrb[0].mxu0 %v125
  %v272 = vpop.f32.mrb[0].mxu0
  %v273 = vadd.f32 0.0, %v272
  %v274 = vpop.f32.mrb[0].mxu0
  %v275 = vpop.f32.mrb[0].mxu0
  %v276 = vadd.f32 0.0, %v275
  %v277 = vpop.f32.mrb[0].mxu0
  %278 = vdwg.mxu0
  %v279 = vpack.c.bf16 %v220, %v217
  %v280 = vpack.c.bf16 %v228, %v225
  %v281 = vpack.c.bf16 %v236, %v233
  %v282 = vpack.c.bf16 %v244, %v241
  %v283 = vpack.c.bf16 %v252, %v249
  %v284 = vpack.c.bf16 %v260, %v257
  %v285 = vpack.c.bf16 %v268, %v265
  %v286 = vpack.c.bf16 %v276, %v273
  %v287 = vld [vmem:[%s3] sm:$0x1]
  %v289 = vlaneseq
  %v290 = vshrl.u32 %v289, 7
  %v291 = vsub.s32 0, %v290
  %v292 = vrot.slane %v287, %v291
  %v310 = vunpack.c.l.b16 %v38
  %v311 = vunpack.c.l.b16 %v39
  %v312 = vunpack.c.l.b16 %v40
  %v313 = vunpack.c.l.b16 %v41
  %v314 = vunpack.c.l.b16 %v42
  %v315 = vunpack.c.l.b16 %v43
  %v316 = vunpack.c.l.b16 %v44
  %v317 = vunpack.c.l.b16 %v45
  %v318 = vunpack.c.l.b16 %v46
  %v319 = vunpack.c.l.b16 %v47
  %v320 = vunpack.c.l.b16 %v48
  %v321 = vunpack.c.l.b16 %v49
  %v322 = vunpack.c.l.b16 %v50
  %v323 = vunpack.c.l.b16 %v51
  %v324 = vunpack.c.l.b16 %v52
  %v325 = vunpack.c.l.b16 %v53
  %v326 = vpack.c.b16 %v311, %v310
  %v327 = vpack.c.b16 %v313, %v312
  %v328 = vpack.c.b16 %v315, %v314
  %v329 = vpack.c.b16 %v317, %v316
  %v330 = vpack.c.b16 %v319, %v318
  %v331 = vpack.c.b16 %v321, %v320
  %v332 = vpack.c.b16 %v323, %v322
  %v333 = vpack.c.b16 %v325, %v324
  %342 = vmatprep.subr.bf16.mxu0 0
  %343 = vmatpush1.bf16.msra.mxu0 %v279
  %344 = vmatprep.subr.bf16.mxu0 0
  %345 = vmatpush1.bf16.msra.mxu0 %v280
  %346 = vmatprep.subr.bf16.mxu0 0
  %347 = vmatpush1.bf16.msra.mxu0 %v281
  %348 = vmatprep.subr.bf16.mxu0 0
  %349 = vmatpush1.bf16.msra.mxu0 %v282
  %350 = vmatprep.subr.bf16.mxu0 0
  %351 = vmatpush1.bf16.msra.mxu0 %v283
  %352 = vmatprep.subr.bf16.mxu0 0
  %353 = vmatpush1.bf16.msra.mxu0 %v284
  %354 = vmatprep.subr.bf16.mxu0 0
  %355 = vmatpush1.bf16.msra.mxu0 %v285
  %356 = vmatprep.subr.bf16.mxu0 0
  %357 = vmatpush1.bf16.msra.mxu0 %v286
  %358 = vmatprep.subr.bf16.mxu0 0
  %359 = vmatpush1.bf16.msra.mxu0 0
  %360 = vmatprep.subr.bf16.mxu0 0
  %361 = vmatpush1.bf16.msra.mxu0 0
  %362 = vmatprep.subr.bf16.mxu0 0
  %363 = vmatpush1.bf16.msra.mxu0 0
  %364 = vmatprep.subr.bf16.mxu0 0
  %365 = vmatpush1.bf16.msra.mxu0 0
  %366 = vmatprep.subr.bf16.mxu0 0
  %367 = vmatpush1.bf16.msra.mxu0 0
  %368 = vmatprep.subr.bf16.mxu0 0
  %369 = vmatpush1.bf16.msra.mxu0 0
  %370 = vmatprep.subr.bf16.mxu0 0
  %371 = vmatpush1.bf16.msra.mxu0 0
  %372 = vmatprep.subr.bf16.mxu0 0
  %373 = vmatpush1.bf16.msra.mxu0 0
  %374 = vmatprep.mubr.bf16.mxu0 0
  %375 = vmatmul.mubr.bf16.gmra.mrb[0].mxu0 %v326
  %v376 = vpop.f32.mrb[0].mxu0
  %v377 = vadd.f32 %v292, %v376
  %v378 = vpop.f32.mrb[0].mxu0
  %v379 = vpop.f32.mrb[0].mxu0
  %v380 = vadd.f32 %v292, %v379
  %v381 = vpop.f32.mrb[0].mxu0
  %382 = vmatprep.mubr.bf16.mxu0 0
  %383 = vmatmul.mubr.bf16.gmra.mrb[0].mxu0 %v327
  %v384 = vpop.f32.mrb[0].mxu0
  %v385 = vadd.f32 %v292, %v384
  %v386 = vpop.f32.mrb[0].mxu0
  %v387 = vpop.f32.mrb[0].mxu0
  %v388 = vadd.f32 %v292, %v387
  %v389 = vpop.f32.mrb[0].mxu0
  %390 = vmatprep.mubr.bf16.mxu0 0
  %391 = vmatmul.mubr.bf16.gmra.mrb[0].mxu0 %v328
  %v392 = vpop.f32.mrb[0].mxu0
  %v393 = vadd.f32 %v292, %v392
  %v394 = vpop.f32.mrb[0].mxu0
  %v395 = vpop.f32.mrb[0].mxu0
  %v396 = vadd.f32 %v292, %v395
  %v397 = vpop.f32.mrb[0].mxu0
  %398 = vmatprep.mubr.bf16.mxu0 0
  %399 = vmatmul.mubr.bf16.gmra.mrb[0].mxu0 %v329
  %v400 = vpop.f32.mrb[0].mxu0
  %v401 = vadd.f32 %v292, %v400
  %v402 = vpop.f32.mrb[0].mxu0
  %v403 = vpop.f32.mrb[0].mxu0
  %v404 = vadd.f32 %v292, %v403
  %v405 = vpop.f32.mrb[0].mxu0
  %406 = vmatprep.mubr.bf16.mxu0 0
  %407 = vmatmul.mubr.bf16.gmra.mrb[0].mxu0 %v330
  %v408 = vpop.f32.mrb[0].mxu0
  %v409 = vadd.f32 %v292, %v408
  %v410 = vpop.f32.mrb[0].mxu0
  %v411 = vpop.f32.mrb[0].mxu0
  %v412 = vadd.f32 %v292, %v411
  %v413 = vpop.f32.mrb[0].mxu0
  %414 = vmatprep.mubr.bf16.mxu0 0
  %415 = vmatmul.mubr.bf16.gmra.mrb[0].mxu0 %v331
  %v416 = vpop.f32.mrb[0].mxu0
  %v417 = vadd.f32 %v292, %v416
  %v418 = vpop.f32.mrb[0].mxu0
  %v419 = vpop.f32.mrb[0].mxu0
  %v420 = vadd.f32 %v292, %v419
  %v421 = vpop.f32.mrb[0].mxu0
  %422 = vmatprep.mubr.bf16.mxu0 0
  %423 = vmatmul.mubr.bf16.gmra.mrb[0].mxu0 %v332
  %v424 = vpop.f32.mrb[0].mxu0
  %v425 = vadd.f32 %v292, %v424
  %v426 = vpop.f32.mrb[0].mxu0
  %v427 = vpop.f32.mrb[0].mxu0
  %v428 = vadd.f32 %v292, %v427
  %v429 = vpop.f32.mrb[0].mxu0
  %430 = vmatprep.mubr.bf16.mxu0 0
  %431 = vmatmul.mubr.bf16.gmra.mrb[0].mxu0 %v333
  %v432 = vpop.f32.mrb[0].mxu0
  %v433 = vadd.f32 %v292, %v432
  %v434 = vpop.f32.mrb[0].mxu0
  %v435 = vpop.f32.mrb[0].mxu0
  %v436 = vadd.f32 %v292, %v435
  %v437 = vpop.f32.mrb[0].mxu0
  %438 = vdwg.mxu0
  %v439 = vmax.f32 %v377, 0.0
  %v440 = vmax.f32 %v380, 0.0
  %v441 = vmax.f32 %v385, 0.0
  %v442 = vmax.f32 %v388, 0.0
  %v443 = vmax.f32 %v393, 0.0
  %v444 = vmax.f32 %v396, 0.0
  %v445 = vmax.f32 %v401, 0.0
  %v446 = vmax.f32 %v404, 0.0
  %v447 = vmax.f32 %v409, 0.0
  %v448 = vmax.f32 %v412, 0.0
  %v449 = vmax.f32 %v417, 0.0
  %v450 = vmax.f32 %v420, 0.0
  %v451 = vmax.f32 %v425, 0.0
  %v452 = vmax.f32 %v428, 0.0
  %v453 = vmax.f32 %v433, 0.0
  %v454 = vmax.f32 %v436, 0.0
  %v455 = vpack.c.bf16 %v440, %v439
  %v456 = vpack.c.bf16 %v442, %v441
  %v457 = vpack.c.bf16 %v444, %v443
  %v458 = vpack.c.bf16 %v446, %v445
  %v459 = vpack.c.bf16 %v448, %v447
  %v460 = vpack.c.bf16 %v450, %v449
  %v461 = vpack.c.bf16 %v452, %v451
  %v462 = vpack.c.bf16 %v454, %v453
  %v463 = vld [vmem:[%s4] sm:$0xf]
  %v464 = vld [vmem:[%s4 + $0x4] sm:$0xf]
  %v465 = vld [vmem:[%s4 + $0x8] sm:$0xf]
  %v466 = vld [vmem:[%s4 + $0xc] sm:$0xf]
  %v467 = vld [vmem:[%s4 + $0x10] sm:$0xf]
  %v468 = vld [vmem:[%s4 + $0x14] sm:$0xf]
  %v469 = vld [vmem:[%s4 + $0x18] sm:$0xf]
  %v470 = vld [vmem:[%s4 + $0x1c] sm:$0xf]
  %v471 = vld [vmem:[%s4 + $0x20] sm:$0xf]
  %v472 = vld [vmem:[%s4 + $0x24] sm:$0xf]
  %v473 = vld [vmem:[%s4 + $0x28] sm:$0xf]
  %v474 = vld [vmem:[%s4 + $0x2c] sm:$0xf]
  %v475 = vld [vmem:[%s4 + $0x30] sm:$0xf]
  %v476 = vld [vmem:[%s4 + $0x34] sm:$0xf]
  %v477 = vld [vmem:[%s4 + $0x38] sm:$0xf]
  %v478 = vld [vmem:[%s4 + $0x3c] sm:$0xf]
  %v495 = vunpack.c.l.b16 %v463
  %v496 = vunpack.c.l.b16 %v464
  %v497 = vunpack.c.l.b16 %v465
  %v498 = vunpack.c.l.b16 %v466
  %v499 = vunpack.c.l.b16 %v467
  %v500 = vunpack.c.l.b16 %v468
  %v501 = vunpack.c.l.b16 %v469
  %v502 = vunpack.c.l.b16 %v470
  %v503 = vunpack.c.l.b16 %v471
  %v504 = vunpack.c.l.b16 %v472
  %v505 = vunpack.c.l.b16 %v473
  %v506 = vunpack.c.l.b16 %v474
  %v507 = vunpack.c.l.b16 %v475
  %v508 = vunpack.c.l.b16 %v476
  %v509 = vunpack.c.l.b16 %v477
  %v510 = vunpack.c.l.b16 %v478
  %v511 = vpack.c.b16 %v496, %v495
  %v512 = vpack.c.b16 %v498, %v497
  %v513 = vpack.c.b16 %v500, %v499
  %v514 = vpack.c.b16 %v502, %v501
  %v515 = vpack.c.b16 %v504, %v503
  %v516 = vpack.c.b16 %v506, %v505
  %v517 = vpack.c.b16 %v508, %v507
  %v518 = vpack.c.b16 %v510, %v509
  %527 = vmatprep.subr.bf16.mxu0 0
  %528 = vmatpush1.bf16.msra.mxu0 %v511
  %529 = vmatprep.subr.bf16.mxu0 0
  %530 = vmatpush1.bf16.msra.mxu0 %v512
  %531 = vmatprep.subr.bf16.mxu0 0
  %532 = vmatpush1.bf16.msra.mxu0 %v513
  %533 = vmatprep.subr.bf16.mxu0 0
  %534 = vmatpush1.bf16.msra.mxu0 %v514
  %535 = vmatprep.subr.bf16.mxu0 0
  %536 = vmatpush1.bf16.msra.mxu0 %v515
  %537 = vmatprep.subr.bf16.mxu0 0
  %538 = vmatpush1.bf16.msra.mxu0 %v516
  %539 = vmatprep.subr.bf16.mxu0 0
  %540 = vmatpush1.bf16.msra.mxu0 %v517
  %541 = vmatprep.subr.bf16.mxu0 0
  %542 = vmatpush1.bf16.msra.mxu0 %v518
  %543 = vmatprep.subr.bf16.mxu0 0
  %544 = vmatpush1.bf16.msra.mxu0 0
  %545 = vmatprep.subr.bf16.mxu0 0
  %546 = vmatpush1.bf16.msra.mxu0 0
  %547 = vmatprep.subr.bf16.mxu0 0
  %548 = vmatpush1.bf16.msra.mxu0 0
  %549 = vmatprep.subr.bf16.mxu0 0
  %550 = vmatpush1.bf16.msra.mxu0 0
  %551 = vmatprep.subr.bf16.mxu0 0
  %552 = vmatpush1.bf16.msra.mxu0 0
  %553 = vmatprep.subr.bf16.mxu0 0
  %554 = vmatpush1.bf16.msra.mxu0 0
  %555 = vmatprep.subr.bf16.mxu0 0
  %556 = vmatpush1.bf16.msra.mxu0 0
  %557 = vmatprep.subr.bf16.mxu0 0
  %558 = vmatpush1.bf16.msra.mxu0 0
  %559 = vmatprep.mubr.bf16.mxu0 0
  %560 = vmatmul.mubr.bf16.gmra.mrb[0].mxu0 %v455
  %v561 = vpop.f32.mrb[0].mxu0
  %v562 = vadd.f32 0.0, %v561
  %v563 = vpop.f32.mrb[0].mxu0
  %v564 = vpop.f32.mrb[0].mxu0
  %v565 = vadd.f32 0.0, %v564
  %v566 = vpop.f32.mrb[0].mxu0
  %567 = vmatprep.mubr.bf16.mxu0 0
  %568 = vmatmul.mubr.bf16.gmra.mrb[0].mxu0 %v456
  %v569 = vpop.f32.mrb[0].mxu0
  %v570 = vadd.f32 0.0, %v569
  %v571 = vpop.f32.mrb[0].mxu0
  %v572 = vpop.f32.mrb[0].mxu0
  %v573 = vadd.f32 0.0, %v572
  %v574 = vpop.f32.mrb[0].mxu0
  %575 = vmatprep.mubr.bf16.mxu0 0
  %576 = vmatmul.mubr.bf16.gmra.mrb[0].mxu0 %v457
  %v577 = vpop.f32.mrb[0].mxu0
  %v578 = vadd.f32 0.0, %v577
  %v579 = vpop.f32.mrb[0].mxu0
  %v580 = vpop.f32.mrb[0].mxu0
  %v581 = vadd.f32 0.0, %v580
  %v582 = vpop.f32.mrb[0].mxu0
  %583 = vmatprep.mubr.bf16.mxu0 0
  %584 = vmatmul.mubr.bf16.gmra.mrb[0].mxu0 %v458
  %v585 = vpop.f32.mrb[0].mxu0
  %v586 = vadd.f32 0.0, %v585
  %v587 = vpop.f32.mrb[0].mxu0
  %v588 = vpop.f32.mrb[0].mxu0
  %v589 = vadd.f32 0.0, %v588
  %v590 = vpop.f32.mrb[0].mxu0
  %591 = vmatprep.mubr.bf16.mxu0 0
  %592 = vmatmul.mubr.bf16.gmra.mrb[0].mxu0 %v459
  %v593 = vpop.f32.mrb[0].mxu0
  %v594 = vadd.f32 0.0, %v593
  %v595 = vpop.f32.mrb[0].mxu0
  %v596 = vpop.f32.mrb[0].mxu0
  %v597 = vadd.f32 0.0, %v596
  %v598 = vpop.f32.mrb[0].mxu0
  %599 = vmatprep.mubr.bf16.mxu0 0
  %600 = vmatmul.mubr.bf16.gmra.mrb[0].mxu0 %v460
  %v601 = vpop.f32.mrb[0].mxu0
  %v602 = vadd.f32 0.0, %v601
  %v603 = vpop.f32.mrb[0].mxu0
  %v604 = vpop.f32.mrb[0].mxu0
  %v605 = vadd.f32 0.0, %v604
  %v606 = vpop.f32.mrb[0].mxu0
  %607 = vmatprep.mubr.bf16.mxu0 0
  %608 = vmatmul.mubr.bf16.gmra.mrb[0].mxu0 %v461
  %v609 = vpop.f32.mrb[0].mxu0
  %v610 = vadd.f32 0.0, %v609
  %v611 = vpop.f32.mrb[0].mxu0
  %v612 = vpop.f32.mrb[0].mxu0
  %v613 = vadd.f32 0.0, %v612
  %v614 = vpop.f32.mrb[0].mxu0
  %615 = vmatprep.mubr.bf16.mxu0 0
  %616 = vmatmul.mubr.bf16.gmra.mrb[0].mxu0 %v462
  %v617 = vpop.f32.mrb[0].mxu0
  %v618 = vadd.f32 0.0, %v617
  %v619 = vpop.f32.mrb[0].mxu0
  %v620 = vpop.f32.mrb[0].mxu0
  %v621 = vadd.f32 0.0, %v620
  %v622 = vpop.f32.mrb[0].mxu0
  %623 = vdwg.mxu0
  %v624 = vpack.c.bf16 %v565, %v562
  %v625 = vpack.c.bf16 %v573, %v570
  %v626 = vpack.c.bf16 %v581, %v578
  %v627 = vpack.c.bf16 %v589, %v586
  %v628 = vpack.c.bf16 %v597, %v594
  %v629 = vpack.c.bf16 %v605, %v602
  %v630 = vpack.c.bf16 %v613, %v610
  %v631 = vpack.c.bf16 %v621, %v618
  %v632 = vld [vmem:[%s5] sm:$0x1]
  %v634 = vlaneseq
  %v635 = vshrl.u32 %v634, 7
  %v636 = vsub.s32 0, %v635
  %v637 = vrot.slane %v632, %v636
  %639 = vmatprep.subr.bf16.mxu0 0
  %640 = vmatpush1.bf16.msra.mxu0 %v624
  %641 = vmatprep.subr.bf16.mxu0 0
  %642 = vmatpush1.bf16.msra.mxu0 %v625
  %643 = vmatprep.subr.bf16.mxu0 0
  %644 = vmatpush1.bf16.msra.mxu0 %v626
  %645 = vmatprep.subr.bf16.mxu0 0
  %646 = vmatpush1.bf16.msra.mxu0 %v627
  %647 = vmatprep.subr.bf16.mxu0 0
  %648 = vmatpush1.bf16.msra.mxu0 %v628
  %649 = vmatprep.subr.bf16.mxu0 0
  %650 = vmatpush1.bf16.msra.mxu0 %v629
  %651 = vmatprep.subr.bf16.mxu0 0
  %652 = vmatpush1.bf16.msra.mxu0 %v630
  %653 = vmatprep.subr.bf16.mxu0 0
  %654 = vmatpush1.bf16.msra.mxu0 %v631
  %655 = vmatprep.subr.bf16.mxu0 0
  %656 = vmatpush1.bf16.msra.mxu0 0
  %657 = vmatprep.subr.bf16.mxu0 0
  %658 = vmatpush1.bf16.msra.mxu0 0
  %659 = vmatprep.subr.bf16.mxu0 0
  %660 = vmatpush1.bf16.msra.mxu0 0
  %661 = vmatprep.subr.bf16.mxu0 0
  %662 = vmatpush1.bf16.msra.mxu0 0
  %663 = vmatprep.subr.bf16.mxu0 0
  %664 = vmatpush1.bf16.msra.mxu0 0
  %665 = vmatprep.subr.bf16.mxu0 0
  %666 = vmatpush1.bf16.msra.mxu0 0
  %667 = vmatprep.subr.bf16.mxu0 0
  %668 = vmatpush1.bf16.msra.mxu0 0
  %669 = vmatprep.subr.bf16.mxu0 0
  %670 = vmatpush1.bf16.msra.mxu0 0
  %671 = vmatprep.mubr.bf16.mxu0 0
  %672 = vmatmul.mubr.bf16.gmra.mrb[0].mxu0 %v326
  %v673 = vpop.f32.mrb[0].mxu0
  %v674 = vadd.f32 %v637, %v673
  %v675 = vpop.f32.mrb[0].mxu0
  %v676 = vpop.f32.mrb[0].mxu0
  %v677 = vadd.f32 %v637, %v676
  %v678 = vpop.f32.mrb[0].mxu0
  %679 = vmatprep.mubr.bf16.mxu0 0
  %680 = vmatmul.mubr.bf16.gmra.mrb[0].mxu0 %v327
  %v681 = vpop.f32.mrb[0].mxu0
  %v682 = vadd.f32 %v637, %v681
  %v683 = vpop.f32.mrb[0].mxu0
  %v684 = vpop.f32.mrb[0].mxu0
  %v685 = vadd.f32 %v637, %v684
  %v686 = vpop.f32.mrb[0].mxu0
  %687 = vmatprep.mubr.bf16.mxu0 0
  %688 = vmatmul.mubr.bf16.gmra.mrb[0].mxu0 %v328
  %v689 = vpop.f32.mrb[0].mxu0
  %v690 = vadd.f32 %v637, %v689
  %v691 = vpop.f32.mrb[0].mxu0
  %v692 = vpop.f32.mrb[0].mxu0
  %v693 = vadd.f32 %v637, %v692
  %v694 = vpop.f32.mrb[0].mxu0
  %695 = vmatprep.mubr.bf16.mxu0 0
  %696 = vmatmul.mubr.bf16.gmra.mrb[0].mxu0 %v329
  %v697 = vpop.f32.mrb[0].mxu0
  %v698 = vadd.f32 %v637, %v697
  %v699 = vpop.f32.mrb[0].mxu0
  %v700 = vpop.f32.mrb[0].mxu0
  %v701 = vadd.f32 %v637, %v700
  %v702 = vpop.f32.mrb[0].mxu0
  %703 = vmatprep.mubr.bf16.mxu0 0
  %704 = vmatmul.mubr.bf16.gmra.mrb[0].mxu0 %v330
  %v705 = vpop.f32.mrb[0].mxu0
  %v706 = vadd.f32 %v637, %v705
  %v707 = vpop.f32.mrb[0].mxu0
  %v708 = vpop.f32.mrb[0].mxu0
  %v709 = vadd.f32 %v637, %v708
  %v710 = vpop.f32.mrb[0].mxu0
  %711 = vmatprep.mubr.bf16.mxu0 0
  %712 = vmatmul.mubr.bf16.gmra.mrb[0].mxu0 %v331
  %v713 = vpop.f32.mrb[0].mxu0
  %v714 = vadd.f32 %v637, %v713
  %v715 = vpop.f32.mrb[0].mxu0
  %v716 = vpop.f32.mrb[0].mxu0
  %v717 = vadd.f32 %v637, %v716
  %v718 = vpop.f32.mrb[0].mxu0
  %719 = vmatprep.mubr.bf16.mxu0 0
  %720 = vmatmul.mubr.bf16.gmra.mrb[0].mxu0 %v332
  %v721 = vpop.f32.mrb[0].mxu0
  %v722 = vadd.f32 %v637, %v721
  %v723 = vpop.f32.mrb[0].mxu0
  %v724 = vpop.f32.mrb[0].mxu0
  %v725 = vadd.f32 %v637, %v724
  %v726 = vpop.f32.mrb[0].mxu0
  %727 = vmatprep.mubr.bf16.mxu0 0
  %728 = vmatmul.mubr.bf16.gmra.mrb[0].mxu0 %v333
  %v729 = vpop.f32.mrb[0].mxu0
  %v730 = vadd.f32 %v637, %v729
  %v731 = vpop.f32.mrb[0].mxu0
  %v732 = vpop.f32.mrb[0].mxu0
  %v733 = vadd.f32 %v637, %v732
  %v734 = vpop.f32.mrb[0].mxu0
  %735 = vdwg.mxu0
  %v736 = vmax.f32 %v674, 0.0
  %v737 = vmax.f32 %v677, 0.0
  %v738 = vmax.f32 %v682, 0.0
  %v739 = vmax.f32 %v685, 0.0
  %v740 = vmax.f32 %v690, 0.0
  %v741 = vmax.f32 %v693, 0.0
  %v742 = vmax.f32 %v698, 0.0
  %v743 = vmax.f32 %v701, 0.0
  %v744 = vmax.f32 %v706, 0.0
  %v745 = vmax.f32 %v709, 0.0
  %v746 = vmax.f32 %v714, 0.0
  %v747 = vmax.f32 %v717, 0.0
  %v748 = vmax.f32 %v722, 0.0
  %v749 = vmax.f32 %v725, 0.0
  %v750 = vmax.f32 %v730, 0.0
  %v751 = vmax.f32 %v733, 0.0
  %v752 = vld [vmem:[%s8] sm:$0x1]
  %v754 = vlaneseq
  %v755 = vshrl.u32 %v754, 7
  %v756 = vsub.s32 0, %v755
  %v757 = vrot.slane %v752, %v756
  %v759 = vmul.f32 %v736, %v757
  %v760 = vmul.f32 %v737, %v757
  %v761 = vmul.f32 %v738, %v757
  %v762 = vmul.f32 %v739, %v757
  %v763 = vmul.f32 %v740, %v757
  %v764 = vmul.f32 %v741, %v757
  %v765 = vmul.f32 %v742, %v757
  %v766 = vmul.f32 %v743, %v757
  %v767 = vmul.f32 %v744, %v757
  %v768 = vmul.f32 %v745, %v757
  %v769 = vmul.f32 %v746, %v757
  %v770 = vmul.f32 %v747, %v757
  %v771 = vmul.f32 %v748, %v757
  %v772 = vmul.f32 %v749, %v757
  %v773 = vmul.f32 %v750, %v757
  %v774 = vmul.f32 %v751, %v757
  %v775 = vld [vmem:[%s9] sm:$0x1]
  %v777 = vlaneseq
  %v778 = vshrl.u32 %v777, 7
  %v779 = vsub.s32 0, %v778
  %v780 = vrot.slane %v775, %v779
  %v782 = vadd.f32 %v759, %v780
  %v783 = vadd.f32 %v760, %v780
  %v784 = vadd.f32 %v761, %v780
  %v785 = vadd.f32 %v762, %v780
  %v786 = vadd.f32 %v763, %v780
  %v787 = vadd.f32 %v764, %v780
  %v788 = vadd.f32 %v765, %v780
  %v789 = vadd.f32 %v766, %v780
  %v790 = vadd.f32 %v767, %v780
  %v791 = vadd.f32 %v768, %v780
  %v792 = vadd.f32 %v769, %v780
  %v793 = vadd.f32 %v770, %v780
  %v794 = vadd.f32 %v771, %v780
  %v795 = vadd.f32 %v772, %v780
  %v796 = vadd.f32 %v773, %v780
  %v797 = vadd.f32 %v774, %v780
  %798 = vst [vmem:[%s10] sm:$0xff] %v782
  %799 = vst [vmem:[%s10 + $0x8] sm:$0xff] %v783
  %800 = vst [vmem:[%s10 + $0x10] sm:$0xff] %v784
  %801 = vst [vmem:[%s10 + $0x18] sm:$0xff] %v785
  %802 = vst [vmem:[%s10 + $0x20] sm:$0xff] %v786
  %803 = vst [vmem:[%s10 + $0x28] sm:$0xff] %v787
  %804 = vst [vmem:[%s10 + $0x30] sm:$0xff] %v788
  %805 = vst [vmem:[%s10 + $0x38] sm:$0xff] %v789
  %806 = vst [vmem:[%s10 + $0x40] sm:$0xff] %v790
  %807 = vst [vmem:[%s10 + $0x48] sm:$0xff] %v791
  %808 = vst [vmem:[%s10 + $0x50] sm:$0xff] %v792
  %809 = vst [vmem:[%s10 + $0x58] sm:$0xff] %v793
  %810 = vst [vmem:[%s10 + $0x60] sm:$0xff] %v794
  %811 = vst [vmem:[%s10 + $0x68] sm:$0xff] %v795
  %812 = vst [vmem:[%s10 + $0x70] sm:$0xff] %v796
  %813 = vst [vmem:[%s10 + $0x78] sm:$0xff] %v797
  %v814 = vpack.c.bf16 %v783, %v782
  %v815 = vpack.c.bf16 %v785, %v784
  %v816 = vpack.c.bf16 %v787, %v786
  %v817 = vpack.c.bf16 %v789, %v788
  %v818 = vpack.c.bf16 %v791, %v790
  %v819 = vpack.c.bf16 %v793, %v792
  %v820 = vpack.c.bf16 %v795, %v794
  %v821 = vpack.c.bf16 %v797, %v796
  %v822 = vld [vmem:[%s6] sm:$0xf]
  %v823 = vld [vmem:[%s6 + $0x4] sm:$0xf]
  %v824 = vld [vmem:[%s6 + $0x8] sm:$0xf]
  %v825 = vld [vmem:[%s6 + $0xc] sm:$0xf]
  %v826 = vld [vmem:[%s6 + $0x10] sm:$0xf]
  %v827 = vld [vmem:[%s6 + $0x14] sm:$0xf]
  %v828 = vld [vmem:[%s6 + $0x18] sm:$0xf]
  %v829 = vld [vmem:[%s6 + $0x1c] sm:$0xf]
  %v830 = vld [vmem:[%s6 + $0x20] sm:$0xf]
  %v831 = vld [vmem:[%s6 + $0x24] sm:$0xf]
  %v832 = vld [vmem:[%s6 + $0x28] sm:$0xf]
  %v833 = vld [vmem:[%s6 + $0x2c] sm:$0xf]
  %v834 = vld [vmem:[%s6 + $0x30] sm:$0xf]
  %v835 = vld [vmem:[%s6 + $0x34] sm:$0xf]
  %v836 = vld [vmem:[%s6 + $0x38] sm:$0xf]
  %v837 = vld [vmem:[%s6 + $0x3c] sm:$0xf]
  %v854 = vunpack.c.l.b16 %v822
  %v855 = vunpack.c.l.b16 %v823
  %v856 = vunpack.c.l.b16 %v824
  %v857 = vunpack.c.l.b16 %v825
  %v858 = vunpack.c.l.b16 %v826
  %v859 = vunpack.c.l.b16 %v827
  %v860 = vunpack.c.l.b16 %v828
  %v861 = vunpack.c.l.b16 %v829
  %v862 = vunpack.c.l.b16 %v830
  %v863 = vunpack.c.l.b16 %v831
  %v864 = vunpack.c.l.b16 %v832
  %v865 = vunpack.c.l.b16 %v833
  %v866 = vunpack.c.l.b16 %v834
  %v867 = vunpack.c.l.b16 %v835
  %v868 = vunpack.c.l.b16 %v836
  %v869 = vunpack.c.l.b16 %v837
  %v870 = vpack.c.b16 %v855, %v854
  %v871 = vpack.c.b16 %v857, %v856
  %v872 = vpack.c.b16 %v859, %v858
  %v873 = vpack.c.b16 %v861, %v860
  %v874 = vpack.c.b16 %v863, %v862
  %v875 = vpack.c.b16 %v865, %v864
  %v876 = vpack.c.b16 %v867, %v866
  %v877 = vpack.c.b16 %v869, %v868
  %886 = vmatprep.subr.bf16.mxu0 0
  %887 = vmatpush1.bf16.msra.mxu0 %v870
  %888 = vmatprep.subr.bf16.mxu0 0
  %889 = vmatpush1.bf16.msra.mxu0 %v871
  %890 = vmatprep.subr.bf16.mxu0 0
  %891 = vmatpush1.bf16.msra.mxu0 %v872
  %892 = vmatprep.subr.bf16.mxu0 0
  %893 = vmatpush1.bf16.msra.mxu0 %v873
  %894 = vmatprep.subr.bf16.mxu0 0
  %895 = vmatpush1.bf16.msra.mxu0 %v874
  %896 = vmatprep.subr.bf16.mxu0 0
  %897 = vmatpush1.bf16.msra.mxu0 %v875
  %898 = vmatprep.subr.bf16.mxu0 0
  %899 = vmatpush1.bf16.msra.mxu0 %v876
  %900 = vmatprep.subr.bf16.mxu0 0
  %901 = vmatpush1.bf16.msra.mxu0 %v877
  %902 = vmatprep.subr.bf16.mxu0 0
  %903 = vmatpush1.bf16.msra.mxu0 0
  %904 = vmatprep.subr.bf16.mxu0 0
  %905 = vmatpush1.bf16.msra.mxu0 0
  %906 = vmatprep.subr.bf16.mxu0 0
  %907 = vmatpush1.bf16.msra.mxu0 0
  %908 = vmatprep.subr.bf16.mxu0 0
  %909 = vmatpush1.bf16.msra.mxu0 0
  %910 = vmatprep.subr.bf16.mxu0 0
  %911 = vmatpush1.bf16.msra.mxu0 0
  %912 = vmatprep.subr.bf16.mxu0 0
  %913 = vmatpush1.bf16.msra.mxu0 0
  %914 = vmatprep.subr.bf16.mxu0 0
  %915 = vmatpush1.bf16.msra.mxu0 0
  %916 = vmatprep.subr.bf16.mxu0 0
  %917 = vmatpush1.bf16.msra.mxu0 0
  %918 = vmatprep.mubr.bf16.mxu0 0
  %919 = vmatmul.mubr.bf16.gmra.mrb[0].mxu0 %v814
  %v920 = vpop.f32.mrb[0].mxu0
  %v921 = vadd.f32 0.0, %v920
  %v922 = vpop.f32.mrb[0].mxu0
  %v923 = vpop.f32.mrb[0].mxu0
  %v924 = vadd.f32 0.0, %v923
  %v925 = vpop.f32.mrb[0].mxu0
  %926 = vmatprep.mubr.bf16.mxu0 0
  %927 = vmatmul.mubr.bf16.gmra.mrb[0].mxu0 %v815
  %v928 = vpop.f32.mrb[0].mxu0
  %v929 = vadd.f32 0.0, %v928
  %v930 = vpop.f32.mrb[0].mxu0
  %v931 = vpop.f32.mrb[0].mxu0
  %v932 = vadd.f32 0.0, %v931
  %v933 = vpop.f32.mrb[0].mxu0
  %934 = vmatprep.mubr.bf16.mxu0 0
  %935 = vmatmul.mubr.bf16.gmra.mrb[0].mxu0 %v816
  %v936 = vpop.f32.mrb[0].mxu0
  %v937 = vadd.f32 0.0, %v936
  %v938 = vpop.f32.mrb[0].mxu0
  %v939 = vpop.f32.mrb[0].mxu0
  %v940 = vadd.f32 0.0, %v939
  %v941 = vpop.f32.mrb[0].mxu0
  %942 = vmatprep.mubr.bf16.mxu0 0
  %943 = vmatmul.mubr.bf16.gmra.mrb[0].mxu0 %v817
  %v944 = vpop.f32.mrb[0].mxu0
  %v945 = vadd.f32 0.0, %v944
  %v946 = vpop.f32.mrb[0].mxu0
  %v947 = vpop.f32.mrb[0].mxu0
  %v948 = vadd.f32 0.0, %v947
  %v949 = vpop.f32.mrb[0].mxu0
  %950 = vmatprep.mubr.bf16.mxu0 0
  %951 = vmatmul.mubr.bf16.gmra.mrb[0].mxu0 %v818
  %v952 = vpop.f32.mrb[0].mxu0
  %v953 = vadd.f32 0.0, %v952
  %v954 = vpop.f32.mrb[0].mxu0
  %v955 = vpop.f32.mrb[0].mxu0
  %v956 = vadd.f32 0.0, %v955
  %v957 = vpop.f32.mrb[0].mxu0
  %958 = vmatprep.mubr.bf16.mxu0 0
  %959 = vmatmul.mubr.bf16.gmra.mrb[0].mxu0 %v819
  %v960 = vpop.f32.mrb[0].mxu0
  %v961 = vadd.f32 0.0, %v960
  %v962 = vpop.f32.mrb[0].mxu0
  %v963 = vpop.f32.mrb[0].mxu0
  %v964 = vadd.f32 0.0, %v963
  %v965 = vpop.f32.mrb[0].mxu0
  %966 = vmatprep.mubr.bf16.mxu0 0
  %967 = vmatmul.mubr.bf16.gmra.mrb[0].mxu0 %v820
  %v968 = vpop.f32.mrb[0].mxu0
  %v969 = vadd.f32 0.0, %v968
  %v970 = vpop.f32.mrb[0].mxu0
  %v971 = vpop.f32.mrb[0].mxu0
  %v972 = vadd.f32 0.0, %v971
  %v973 = vpop.f32.mrb[0].mxu0
  %974 = vmatprep.mubr.bf16.mxu0 0
  %975 = vmatmul.mubr.bf16.gmra.mrb[0].mxu0 %v821
  %v976 = vpop.f32.mrb[0].mxu0
  %v977 = vadd.f32 0.0, %v976
  %v978 = vpop.f32.mrb[0].mxu0
  %v979 = vpop.f32.mrb[0].mxu0
  %v980 = vadd.f32 0.0, %v979
  %v981 = vpop.f32.mrb[0].mxu0
  %982 = vdwg.mxu0
  %v983 = vpack.c.bf16 %v924, %v921
  %v984 = vpack.c.bf16 %v932, %v929
  %v985 = vpack.c.bf16 %v940, %v937
  %v986 = vpack.c.bf16 %v948, %v945
  %v987 = vpack.c.bf16 %v956, %v953
  %v988 = vpack.c.bf16 %v964, %v961
  %v989 = vpack.c.bf16 %v972, %v969
  %v990 = vpack.c.bf16 %v980, %v977
  %v991 = vld [vmem:[%s7] sm:$0x1]
  %v993 = vlaneseq
  %v994 = vshrl.u32 %v993, 7
  %v995 = vsub.s32 0, %v994
  %v996 = vrot.slane %v991, %v995
  %998 = vmatprep.subr.bf16.mxu0 0
  %999 = vmatpush1.bf16.msra.mxu0 %v983
  %1000 = vmatprep.subr.bf16.mxu0 0
  %1001 = vmatpush1.bf16.msra.mxu0 %v984
  %1002 = vmatprep.subr.bf16.mxu0 0
  %1003 = vmatpush1.bf16.msra.mxu0 %v985
  %1004 = vmatprep.subr.bf16.mxu0 0
  %1005 = vmatpush1.bf16.msra.mxu0 %v986
  %1006 = vmatprep.subr.bf16.mxu0 0
  %1007 = vmatpush1.bf16.msra.mxu0 %v987
  %1008 = vmatprep.subr.bf16.mxu0 0
  %1009 = vmatpush1.bf16.msra.mxu0 %v988
  %1010 = vmatprep.subr.bf16.mxu0 0
  %1011 = vmatpush1.bf16.msra.mxu0 %v989
  %1012 = vmatprep.subr.bf16.mxu0 0
  %1013 = vmatpush1.bf16.msra.mxu0 %v990
  %1014 = vmatprep.subr.bf16.mxu0 0
  %1015 = vmatpush1.bf16.msra.mxu0 0
  %1016 = vmatprep.subr.bf16.mxu0 0
  %1017 = vmatpush1.bf16.msra.mxu0 0
  %1018 = vmatprep.subr.bf16.mxu0 0
  %1019 = vmatpush1.bf16.msra.mxu0 0
  %1020 = vmatprep.subr.bf16.mxu0 0
  %1021 = vmatpush1.bf16.msra.mxu0 0
  %1022 = vmatprep.subr.bf16.mxu0 0
  %1023 = vmatpush1.bf16.msra.mxu0 0
  %1024 = vmatprep.subr.bf16.mxu0 0
  %1025 = vmatpush1.bf16.msra.mxu0 0
  %1026 = vmatprep.subr.bf16.mxu0 0
  %1027 = vmatpush1.bf16.msra.mxu0 0
  %1028 = vmatprep.subr.bf16.mxu0 0
  %1029 = vmatpush1.bf16.msra.mxu0 0
  %1030 = vmatprep.mubr.bf16.mxu0 0
  %1031 = vmatmul.mubr.bf16.gmra.mrb[0].mxu0 %v326
  %v1032 = vpop.f32.mrb[0].mxu0
  %v1033 = vadd.f32 %v996, %v1032
  %v1034 = vpop.f32.mrb[0].mxu0
  %v1035 = vpop.f32.mrb[0].mxu0
  %v1036 = vadd.f32 %v996, %v1035
  %v1037 = vpop.f32.mrb[0].mxu0
  %1038 = vmatprep.mubr.bf16.mxu0 0
  %1039 = vmatmul.mubr.bf16.gmra.mrb[0].mxu0 %v327
  %v1040 = vpop.f32.mrb[0].mxu0
  %v1041 = vadd.f32 %v996, %v1040
  %v1042 = vpop.f32.mrb[0].mxu0
  %v1043 = vpop.f32.mrb[0].mxu0
  %v1044 = vadd.f32 %v996, %v1043
  %v1045 = vpop.f32.mrb[0].mxu0
  %1046 = vmatprep.mubr.bf16.mxu0 0
  %1047 = vmatmul.mubr.bf16.gmra.mrb[0].mxu0 %v328
  %v1048 = vpop.f32.mrb[0].mxu0
  %v1049 = vadd.f32 %v996, %v1048
  %v1050 = vpop.f32.mrb[0].mxu0
  %v1051 = vpop.f32.mrb[0].mxu0
  %v1052 = vadd.f32 %v996, %v1051
  %v1053 = vpop.f32.mrb[0].mxu0
  %1054 = vmatprep.mubr.bf16.mxu0 0
  %1055 = vmatmul.mubr.bf16.gmra.mrb[0].mxu0 %v329
  %v1056 = vpop.f32.mrb[0].mxu0
  %v1057 = vadd.f32 %v996, %v1056
  %v1058 = vpop.f32.mrb[0].mxu0
  %v1059 = vpop.f32.mrb[0].mxu0
  %v1060 = vadd.f32 %v996, %v1059
  %v1061 = vpop.f32.mrb[0].mxu0
  %1062 = vmatprep.mubr.bf16.mxu0 0
  %1063 = vmatmul.mubr.bf16.gmra.mrb[0].mxu0 %v330
  %v1064 = vpop.f32.mrb[0].mxu0
  %v1065 = vadd.f32 %v996, %v1064
  %v1066 = vpop.f32.mrb[0].mxu0
  %v1067 = vpop.f32.mrb[0].mxu0
  %v1068 = vadd.f32 %v996, %v1067
  %v1069 = vpop.f32.mrb[0].mxu0
  %1070 = vmatprep.mubr.bf16.mxu0 0
  %1071 = vmatmul.mubr.bf16.gmra.mrb[0].mxu0 %v331
  %v1072 = vpop.f32.mrb[0].mxu0
  %v1073 = vadd.f32 %v996, %v1072
  %v1074 = vpop.f32.mrb[0].mxu0
  %v1075 = vpop.f32.mrb[0].mxu0
  %v1076 = vadd.f32 %v996, %v1075
  %v1077 = vpop.f32.mrb[0].mxu0
  %1078 = vmatprep.mubr.bf16.mxu0 0
  %1079 = vmatmul.mubr.bf16.gmra.mrb[0].mxu0 %v332
  %v1080 = vpop.f32.mrb[0].mxu0
  %v1081 = vadd.f32 %v996, %v1080
  %v1082 = vpop.f32.mrb[0].mxu0
  %v1083 = vpop.f32.mrb[0].mxu0
  %v1084 = vadd.f32 %v996, %v1083
  %v1085 = vpop.f32.mrb[0].mxu0
  %1086 = vmatprep.mubr.bf16.mxu0 0
  %1087 = vmatmul.mubr.bf16.gmra.mrb[0].mxu0 %v333
  %v1088 = vpop.f32.mrb[0].mxu0
  %v1089 = vadd.f32 %v996, %v1088
  %v1090 = vpop.f32.mrb[0].mxu0
  %v1091 = vpop.f32.mrb[0].mxu0
  %v1092 = vadd.f32 %v996, %v1091
  %v1093 = vpop.f32.mrb[0].mxu0
  %1094 = vdwg.mxu0
  %1095 = vst [vmem:[%s11] sm:$0xff] %v1033
  %1096 = vst [vmem:[%s11 + $0x8] sm:$0xff] %v1036
  %1097 = vst [vmem:[%s11 + $0x10] sm:$0xff] %v1041
  %1098 = vst [vmem:[%s11 + $0x18] sm:$0xff] %v1044
  %1099 = vst [vmem:[%s11 + $0x20] sm:$0xff] %v1049
  %1100 = vst [vmem:[%s11 + $0x28] sm:$0xff] %v1052
  %1101 = vst [vmem:[%s11 + $0x30] sm:$0xff] %v1057
  %1102 = vst [vmem:[%s11 + $0x38] sm:$0xff] %v1060
  %1103 = vst [vmem:[%s11 + $0x40] sm:$0xff] %v1065
  %1104 = vst [vmem:[%s11 + $0x48] sm:$0xff] %v1068
  %1105 = vst [vmem:[%s11 + $0x50] sm:$0xff] %v1073
  %1106 = vst [vmem:[%s11 + $0x58] sm:$0xff] %v1076
  %1107 = vst [vmem:[%s11 + $0x60] sm:$0xff] %v1081
  %1108 = vst [vmem:[%s11 + $0x68] sm:$0xff] %v1084
  %1109 = vst [vmem:[%s11 + $0x70] sm:$0xff] %v1089
  %1110 = vst [vmem:[%s11 + $0x78] sm:$0xff] %v1092
  // Predicated region
  $region42: #{gcn_forward.1} parent=0 // pred_check
    _
  $region43: #{gcn_forward.1} parent=0 // pred_check_branch
    %1112 = sbr.rel (0) target = $region45
  $region44: #{gcn_forward.1} parent=0 // pred_region
    _
  $region45: #{gcn_forward.1} parent=0 // pred_fallthru
    _
  // Predicated region
  $region46: #{gcn_forward.1} parent=0 // pred_check
    _
  $region47: #{gcn_forward.1} parent=0 // pred_check_branch
    %1114 = sbr.rel (0) target = $region49
  $region48: #{gcn_forward.1} parent=0 // pred_region
    _
  $region49: #{gcn_forward.1} parent=0 // pred_fallthru
    _
  // Predicated region
  $region50: #{gcn_forward.1} parent=0 // pred_check
    _
  $region51: #{gcn_forward.1} parent=0 // pred_check_branch
    %1116 = sbr.rel (0) target = $region53
  $region52: #{gcn_forward.1} parent=0 // pred_region
    _
  $region53: #{gcn_forward.1} parent=0 // pred_fallthru
    _
  // Predicated region
  $region54: #{gcn_forward.1} parent=0 // pred_check
    _
  $region55: #{gcn_forward.1} parent=0 // pred_check_branch
    %1118 = sbr.rel (0) target = $region57
  $region56: #{gcn_forward.1} parent=0 // pred_region
    _
  $region57: #{gcn_forward.1} parent=0 // pred_fallthru
    _

</llo_original>
